<compile_context>
chip_gen: v7x
topology: tpu7x:2x2x1
jax: 0.10.0
libtpu: 0.0.40
codegen_flags: <defaults>
</compile_context>

<pallas_src>
import jax
import jax.numpy as jnp
from jax.experimental import pallas as pl
from jax.experimental.pallas import tpu as pltpu


def _round_up(x, m):
    return ((x + m - 1) // m) * m


def _poly_loss_kernel(num_classes, epsilon, n_valid, tile_n, inv_n):
    """logits_ref: (C, TILE_N) native dtype; target_ref: (1, TILE_N) int32;
    loss_ref: (1, 1) f32 output, resident across the grid (accumulator)."""

    def kernel(logits_ref, target_ref, loss_ref):
        i = pl.program_id(0)

        @pl.when(i == 0)
        def _init():
            loss_ref[...] = jnp.zeros_like(loss_ref)

        x = logits_ref[...].astype(jnp.float32)   # single per-tile cast (bf16 -> f32)
        tgt = target_ref[...]                     # (1, TILE_N) int32

        # Unrolled reduction over the tiny class dimension (sublane rows).
        m = x[0:1, :]
        for c in range(1, num_classes):
            m = jnp.maximum(m, x[c:c + 1, :])

        sum_exp = jnp.zeros_like(m)
        tgt_logit = jnp.zeros_like(m)
        for c in range(num_classes):
            row = x[c:c + 1, :]
            sum_exp = sum_exp + jnp.exp(row - m)
            tgt_logit = tgt_logit + jnp.where(tgt == c, row, 0.0)

        # log_softmax at the target class, computed directly (no (N,C) lsm /
        # one_hot temporaries):  logpt = x[target] - max - logsumexp.
        logpt = tgt_logit - m - jnp.log(sum_exp)              # (1, TILE_N)

        # Matches the PyTorch module: ce = -logpt, poly term uses the
        # LOG-probability (one_hot * LogSoftmax), i.e. epsilon * (1 - logpt).
        per_sample = -logpt + epsilon * (1.0 - logpt)

        # Mask zero-padded remainder columns so the divisor is exactly N.
        col = jax.lax.broadcasted_iota(jnp.int32, (1, tile_n), 1) + i * tile_n
        masked = jnp.where(col < n_valid, per_sample, 0.0)

        loss_ref[...] += jnp.sum(masked, keepdims=True)

        @pl.when(i == pl.num_programs(0) - 1)
        def _finalize():
            loss_ref[...] = loss_ref[...] * jnp.float32(inv_n)

    return kernel


def poly_loss_ce(logits, target, num_classes=2, epsilon=1.0, tile_n=2048):
    """logits: (N, C) float (any float dtype), target: (N,) int -> scalar f32 loss."""
    n, c = logits.shape
    assert c == num_classes

    # Lane-dense layout: (C, N) logits in native dtype, (1, N) int32 targets.
    logits_t = jnp.transpose(logits)
    target_row = target.astype(jnp.int32).reshape(1, n)

    tile = min(tile_n, _round_up(n, 128))
    n_pad = _round_up(n, tile)
    if n_pad != n:
        logits_t = jnp.pad(logits_t, ((0, 0), (0, n_pad - n)))
        target_row = jnp.pad(target_row, ((0, 0), (0, n_pad - n)))
    grid = n_pad // tile

    cost = pl.CostEstimate(
        flops=6 * n * c,
        transcendentals=n * (c + 1),
        bytes_accessed=n * c * logits.dtype.itemsize + n * 4 + 4,
    )

    out = pl.pallas_call(
        _poly_loss_kernel(num_classes, float(epsilon), n, tile, 1.0 / n),
        out_shape=jax.ShapeDtypeStruct((1, 1), jnp.float32),
        grid=(grid,),
        in_specs=[
            pl.BlockSpec((c, tile), lambda i: (0, i)),     # logits (C, TILE_N)
            pl.BlockSpec((1, tile), lambda i: (0, i)),     # targets (1, TILE_N)
        ],
        out_specs=pl.BlockSpec((1, 1), lambda i: (0, 0)),  # resident accumulator
        compiler_params=pltpu.CompilerParams(
            dimension_semantics=("arbitrary",)),
        cost_estimate=cost,
    )(logits_t, target_row)
    return out[0, 0]


def _poly_loss_ce_ref(logits, target, num_classes, epsilon):
    lsm = jax.nn.log_softmax(logits.astype(jnp.float32), axis=-1)
    onehot = jax.nn.one_hot(target, num_classes, dtype=jnp.float32)
    logpt = jnp.sum(onehot * lsm, axis=-1)
    ce = -logpt
    return jnp.mean(ce + epsilon * (1.0 - logpt))


if __name__ == "__main__":
    key = jax.random.PRNGKey(0)
    k1, k2, k3, k4 = jax.random.split(key, 4)

    # --- small case matching the module defaults-ish shapes ---
    batch = 8
    num_classes = 4
    epsilon = 1.0
    logits = jax.random.normal(k1, (batch, num_classes), dtype=jnp.float32)
    target = jax.random.randint(k2, (batch,), 0, num_classes, dtype=jnp.int32)

    loss = poly_loss_ce(logits, target, num_classes=num_classes, epsilon=epsilon)
    loss = jax.block_until_ready(loss)
    ref = _poly_loss_ce_ref(logits, target, num_classes, epsilon)
    assert jnp.allclose(loss, ref, atol=1e-5, rtol=1e-5), (loss, ref)

    # --- multi-tile + remainder mask + native-bf16 wire-format exercise ---
    batch2, nc2, eps2 = 1000, 3, 2.0
    logits2 = jax.random.normal(k3, (batch2, nc2), dtype=jnp.bfloat16)
    target2 = jax.random.randint(k4, (batch2,), 0, nc2, dtype=jnp.int32)

    loss2 = poly_loss_ce(logits2, target2, num_classes=nc2, epsilon=eps2, tile_n=256)
    loss2 = jax.block_until_ready(loss2)
    ref2 = _poly_loss_ce_ref(logits2, target2, nc2, eps2)
    assert jnp.allclose(loss2, ref2, atol=1e-4, rtol=1e-4), (loss2, ref2)

    print("KERNEL_OK")
</pallas_src>

<mosaic_0001>
module attributes {stable_mosaic.version = 11 : i64} {
  func.func @kernel(%arg0: i32, %arg1: memref<4x128xf32, #tpu.memory_space<vmem>>, %arg2: memref<1x128xi32, #tpu.memory_space<vmem>>, %arg3: memref<1x1xf32, #tpu.memory_space<vmem>>) attributes {dimension_semantics = [#tpu.dimension_semantics<arbitrary>], iteration_bounds = array<i64: 1>, scalar_prefetch = 0 : i64, scratch_operands = 0 : i64, tpu.core_type = #tpu.core_type<tc>, window_params = [{transform_indices = @transform_0, window_bounds = array<i64: 4, 128>}, {transform_indices = @transform_1, window_bounds = array<i64: 1, 128>}, {pipeline_mode = #tpu.pipeline_mode<synchronous>, transform_indices = @transform_2, window_bounds = array<i64: 1, 1>}]} {
    %c0_i32 = arith.constant 0 : i32
    %0 = arith.cmpi eq, %arg0, %c0_i32 : i32
    %1 = arith.extui %0 : i1 to i32
    %c0_i32_0 = arith.constant 0 : i32
    %2 = arith.cmpi ne, %1, %c0_i32_0 : i32
    scf.if %2 {
      %cst_21 = arith.constant 0.000000e+00 : f32
      %79 = vector.broadcast %cst_21 : f32 to vector<1x1xf32>
      %c0_22 = arith.constant 0 : index
      %c0_23 = arith.constant 0 : index
      %80 = vector.load %arg3[%c0_22, %c0_23] : memref<1x1xf32, #tpu.memory_space<vmem>>, vector<1x1xf32>
      tpu.vector_store %arg3[%c0_22, %c0_23], %79 {strides = array<i32>} : memref<1x1xf32, #tpu.memory_space<vmem>>, vector<1x1xf32>,
    } else {
    }
    %c0 = arith.constant 0 : index
    %c0_1 = arith.constant 0 : index
    %3 = vector.load %arg1[%c0, %c0_1] : memref<4x128xf32, #tpu.memory_space<vmem>>, vector<4x128xf32>
    %c0_2 = arith.constant 0 : index
    %c0_3 = arith.constant 0 : index
    %4 = vector.load %arg2[%c0_2, %c0_3] : memref<1x128xi32, #tpu.memory_space<vmem>>, vector<1x128xi32>
    %5 = vector.extract_strided_slice %3 {offsets = [0, 0], sizes = [1, 128], strides = [1, 1]} : vector<4x128xf32> to vector<1x128xf32>
    %6 = vector.extract_strided_slice %3 {offsets = [1, 0], sizes = [1, 128], strides = [1, 1]} : vector<4x128xf32> to vector<1x128xf32>
    %7 = arith.maximumf %5, %6 : vector<1x128xf32>
    %8 = vector.extract_strided_slice %3 {offsets = [2, 0], sizes = [1, 128], strides = [1, 1]} : vector<4x128xf32> to vector<1x128xf32>
    %9 = arith.maximumf %7, %8 : vector<1x128xf32>
    %10 = vector.extract_strided_slice %3 {offsets = [3, 0], sizes = [1, 128], strides = [1, 1]} : vector<4x128xf32> to vector<1x128xf32>
    %11 = arith.maximumf %9, %10 : vector<1x128xf32>
    %cst = arith.constant 0.000000e+00 : f32
    %12 = vector.broadcast %cst : f32 to vector<1x128xf32>
    %cst_4 = arith.constant 0.000000e+00 : f32
    %13 = vector.broadcast %cst_4 : f32 to vector<1x128xf32>
    %14 = vector.extract_strided_slice %3 {offsets = [0, 0], sizes = [1, 128], strides = [1, 1]} : vector<4x128xf32> to vector<1x128xf32>
    %15 = arith.subf %14, %11 : vector<1x128xf32>
    %16 = math.exp %15 : vector<1x128xf32>
    %17 = arith.addf %12, %16 : vector<1x128xf32>
    %c0_i32_5 = arith.constant 0 : i32
    %18 = vector.broadcast %c0_i32_5 : i32 to vector<1x128xi32>
    %19 = arith.cmpi eq, %4, %18 : vector<1x128xi32>
    %cst_6 = arith.constant 0.000000e+00 : f32
    %20 = vector.broadcast %cst_6 : f32 to vector<1x128xf32>
    %21 = arith.select %19, %14, %20 : vector<1x128xi1>, vector<1x128xf32>
    %22 = arith.addf %13, %21 : vector<1x128xf32>
    %23 = vector.extract_strided_slice %3 {offsets = [1, 0], sizes = [1, 128], strides = [1, 1]} : vector<4x128xf32> to vector<1x128xf32>
    %24 = arith.subf %23, %11 : vector<1x128xf32>
    %25 = math.exp %24 : vector<1x128xf32>
    %26 = arith.addf %17, %25 : vector<1x128xf32>
    %c1_i32 = arith.constant 1 : i32
    %27 = vector.broadcast %c1_i32 : i32 to vector<1x128xi32>
    %28 = arith.cmpi eq, %4, %27 : vector<1x128xi32>
    %cst_7 = arith.constant 0.000000e+00 : f32
    %29 = vector.broadcast %cst_7 : f32 to vector<1x128xf32>
    %30 = arith.select %28, %23, %29 : vector<1x128xi1>, vector<1x128xf32>
    %31 = arith.addf %22, %30 : vector<1x128xf32>
    %32 = vector.extract_strided_slice %3 {offsets = [2, 0], sizes = [1, 128], strides = [1, 1]} : vector<4x128xf32> to vector<1x128xf32>
    %33 = arith.subf %32, %11 : vector<1x128xf32>
    %34 = math.exp %33 : vector<1x128xf32>
    %35 = arith.addf %26, %34 : vector<1x128xf32>
    %c2_i32 = arith.constant 2 : i32
    %36 = vector.broadcast %c2_i32 : i32 to vector<1x128xi32>
    %37 = arith.cmpi eq, %4, %36 : vector<1x128xi32>
    %cst_8 = arith.constant 0.000000e+00 : f32
    %38 = vector.broadcast %cst_8 : f32 to vector<1x128xf32>
    %39 = arith.select %37, %32, %38 : vector<1x128xi1>, vector<1x128xf32>
    %40 = arith.addf %31, %39 : vector<1x128xf32>
    %41 = vector.extract_strided_slice %3 {offsets = [3, 0], sizes = [1, 128], strides = [1, 1]} : vector<4x128xf32> to vector<1x128xf32>
    %42 = arith.subf %41, %11 : vector<1x128xf32>
    %43 = math.exp %42 : vector<1x128xf32>
    %44 = arith.addf %35, %43 : vector<1x128xf32>
    %c3_i32 = arith.constant 3 : i32
    %45 = vector.broadcast %c3_i32 : i32 to vector<1x128xi32>
    %46 = arith.cmpi eq, %4, %45 : vector<1x128xi32>
    %cst_9 = arith.constant 0.000000e+00 : f32
    %47 = vector.broadcast %cst_9 : f32 to vector<1x128xf32>
    %48 = arith.select %46, %41, %47 : vector<1x128xi1>, vector<1x128xf32>
    %49 = arith.addf %40, %48 : vector<1x128xf32>
    %50 = arith.subf %49, %11 : vector<1x128xf32>
    %51 = math.log %44 : vector<1x128xf32>
    %52 = arith.subf %50, %51 : vector<1x128xf32>
    %cst_10 = arith.constant 0.000000e+00 : f32
    %53 = vector.broadcast %cst_10 : f32 to vector<1x128xf32>
    %54 = arith.subf %53, %52 : vector<1x128xf32>
    %cst_11 = arith.constant 1.000000e+00 : f32
    %55 = vector.broadcast %cst_11 : f32 to vector<1x128xf32>
    %56 = arith.subf %55, %52 : vector<1x128xf32>
    %cst_12 = arith.constant 1.000000e+00 : f32
    %57 = vector.broadcast %cst_12 : f32 to vector<1x128xf32>
    %58 = arith.mulf %57, %56 : vector<1x128xf32>
    %59 = arith.addf %54, %58 : vector<1x128xf32>
    %60 = tpu.iota {dimensions = array<i32: 1>} : vector<1x128xi32>
    %c128_i32 = arith.constant 128 : i32
    %61 = arith.muli %arg0, %c128_i32 : i32
    %62 = vector.broadcast %61 : i32 to vector<1x128xi32>
    %63 = arith.addi %60, %62 : vector<1x128xi32>
    %c8_i32 = arith.constant 8 : i32
    %64 = vector.broadcast %c8_i32 : i32 to vector<1x128xi32>
    %65 = arith.cmpi slt, %63, %64 : vector<1x128xi32>
    %cst_13 = arith.constant 0.000000e+00 : f32
    %66 = vector.broadcast %cst_13 : f32 to vector<1x128xf32>
    %67 = arith.select %65, %59, %66 : vector<1x128xi1>, vector<1x128xf32>
    %c0_14 = arith.constant 0 : index
    %c0_15 = arith.constant 0 : index
    %68 = vector.load %arg3[%c0_14, %c0_15] : memref<1x1xf32, #tpu.memory_space<vmem>>, vector<1x1xf32>
    %69 = vector.shape_cast %67 : vector<1x128xf32> to vector<1x1x128xf32>
    %cst_16 = arith.constant dense<0.000000e+00> : vector<1xf32>
    %70 = vector.multi_reduction <add>, %69, %cst_16 [1, 2] : vector<1x1x128xf32> to vector<1xf32>
    %71 = vector.shape_cast %70 : vector<1xf32> to vector<1x1x1xf32>
    %72 = vector.extract %71[0, 0, 0] : f32 from vector<1x1x1xf32>
    %73 = vector.broadcast %72 : f32 to vector<1x1xf32>
    %74 = arith.addf %68, %73 : vector<1x1xf32>
    %c0_17 = arith.constant 0 : index
    %c0_18 = arith.constant 0 : index
    %75 = vector.load %arg3[%c0_17, %c0_18] : memref<1x1xf32, #tpu.memory_space<vmem>>, vector<1x1xf32>
    tpu.vector_store %arg3[%c0_17, %c0_18], %74 {strides = array<i32>} : memref<1x1xf32, #tpu.memory_space<vmem>>, vector<1x1xf32>,
    %c0_i32_19 = arith.constant 0 : i32
    %76 = arith.cmpi eq, %arg0, %c0_i32_19 : i32
    %77 = arith.extui %76 : i1 to i32
    %c0_i32_20 = arith.constant 0 : i32
    %78 = arith.cmpi ne, %77, %c0_i32_20 : i32
    scf.if %78 {
      %c0_21 = arith.constant 0 : index
      %c0_22 = arith.constant 0 : index
      %79 = vector.load %arg3[%c0_21, %c0_22] : memref<1x1xf32, #tpu.memory_space<vmem>>, vector<1x1xf32>
      %cst_23 = arith.constant 1.250000e-01 : f32
      %80 = vector.broadcast %cst_23 : f32 to vector<1x1xf32>
      %81 = arith.mulf %79, %80 : vector<1x1xf32>
      %c0_24 = arith.constant 0 : index
      %c0_25 = arith.constant 0 : index
      %82 = vector.load %arg3[%c0_24, %c0_25] : memref<1x1xf32, #tpu.memory_space<vmem>>, vector<1x1xf32>
      tpu.vector_store %arg3[%c0_24, %c0_25], %81 {strides = array<i32>} : memref<1x1xf32, #tpu.memory_space<vmem>>, vector<1x1xf32>,
    } else {
    }
    return
  }
  func.func @transform_0(%arg0: i32) -> (i32, i32) {
    %c0_i32 = arith.constant 0 : i32
    %c0_i32_0 = arith.constant 0 : i32
    return %c0_i32, %arg0 : i32, i32
  }
  func.func @transform_1(%arg0: i32) -> (i32, i32) {
    %c0_i32 = arith.constant 0 : i32
    %c0_i32_0 = arith.constant 0 : i32
    return %c0_i32, %arg0 : i32, i32
  }
  func.func @transform_2(%arg0: i32) -> (i32, i32) {
    %c0_i32 = arith.constant 0 : i32
    %c0_i32_0 = arith.constant 0 : i32
    %c0_i32_1 = arith.constant 0 : i32
    return %c0_i32, %c0_i32_0 : i32, i32
  }
}

</mosaic_0001>

<llo_original>
// kernel: tpu_custom_call.1
$region0: #{tpu_custom_call.1}
  #allocation0 [shape = 'u32[]', space=smem, size = 0x4, offset = 0x4, fixed_abs, tag = 'smem constant byte address 0x4 - core index']
  #allocation1 [shape = 'u32[144,128]{1,0:T(1,128)}', space=vmem, size = 0x12000, scoped, tag = 'internal scratch']
  %s0 = inlined_call_operand.hbm [shape: f32[4,128], index: 0, kind: input, shape index: {}]
  %s1 = inlined_call_operand.vmem [shape: s32[1,128], index: 1, kind: input, shape index: {}]
  %s2 = inlined_call_operand.hbm [shape: f32[1,1], index: 2, kind: output, shape index: {}]
  %s3 = sld [smem:[#allocation0]]
  $region30: #{tpu_custom_call.1} parent=0
    _
  %s5 = ssub.s32 1, %s3
  %s6 = scalar_select 0, %s5, %s3
  $region1: #{tpu_custom_call.1} parent=0
    #allocation2 [shape = 'u8[2048]{0}', space=vmem, size = 0x800, scoped, tag = 'input window, operand 0, single buffered']
    #allocation3 [shape = 's32[1]{0}', space=sflag, size = 0x4, scoped, tag = 'scoped memory for tpu_custom_call.1']
    #allocation4 [shape = 's32[1]{0}', space=sflag, size = 0x4, scoped, tag = 'scoped memory for tpu_custom_call.1']
    #allocation5 [shape = 'u8[512]{0}', space=vmem, size = 0x400, scoped, tag = 'output window, operand 0, single buffered']
    %7 = vsyncpa [#allocation3], 0
    %8 = vsyncpa [#allocation4], 0
    // Predicated region
    $region2: #{tpu_custom_call.1} parent=1 // pred_check
      _
    $region3: #{tpu_custom_call.1} parent=1 // pred_check_branch
      %10 = sbr.rel (0) target = $region5
    $region4: #{tpu_custom_call.1} parent=1 // pred_region
      %s12 = ssub.s32 64, 64
      %13 = vsyncadd [#allocation3], %s12
      %s15 = sshll.u32 [#allocation2], 4
      %s16 = int_to_ptr.vmem [resolvable:$true] %s15
      %18 = dma.hbm_to_vmem [thread:$0]  %s0, 64, %s16, [#allocation3]
    $region5: #{tpu_custom_call.1} parent=1 // pred_fallthru
      _
    // Predicated region
    $region6: #{tpu_custom_call.1} parent=1 // pred_check
      _
    $region7: #{tpu_custom_call.1} parent=1 // pred_check_branch
      %20 = sbr.rel (0) target = $region9
    $region8: #{tpu_custom_call.1} parent=1 // pred_region
      _
    $region9: #{tpu_custom_call.1} parent=1 // pred_fallthru
      _
    // Predicated region
    $region10: #{tpu_custom_call.1} parent=1 // pred_check
      _
    $region11: #{tpu_custom_call.1} parent=1 // pred_check_branch
      %22 = sbr.rel (0) target = $region13
    $region12: #{tpu_custom_call.1} parent=1 // pred_region
      %23 = dma.done [#allocation3], 64
    $region13: #{tpu_custom_call.1} parent=1 // pred_fallthru
      _
    %p24 = scmp.eq.s32.totalorder 0, 0
    // Predicated region
    $region14: #{tpu_custom_call.1} parent=1 // pred_check
      %p25 = pneg %p24
    $region15: #{tpu_custom_call.1} parent=1 // pred_check_branch
      %27 = sbr.rel (%p25) target = $region17
    $region16: #{tpu_custom_call.1} parent=1 // pred_region
      %vm28 = vcmask 0
      %29 = vst.msk [vmem:[#allocation5] sm:$0x1] %vm28, 0.0
    $region17: #{tpu_custom_call.1} parent=1 // pred_fallthru
      _
    %v30 = vld [vmem:[#allocation2] sm:$0xf]
    %v31 = vld [vmem:[%s1] sm:$0x1]
    %v33 = vrot.slane %v30, 1
    %v35 = vmax.f32 %v30, %v33
    %v36 = vrot.slane %v30, 2
    %v38 = vmax.f32 %v35, %v36
    %v39 = vrot.slane %v30, 3
    %v41 = vmax.f32 %v38, %v39
    %v42 = vsub.f32 %v30, %v41
    %v43 = vmul.f32 %v42, 1.442695
    %v44 = vpow.pop %v43
    %v45 = vadd.f32 %v44, 0.0
    %vm46 = vcmp.eq.s32.totalorder %v31, 0
    %v47 = vsel %vm46, %v30, 0.0
    %v48 = vadd.f32 %v47, 0.0
    %v50 = vrot.slane %v41, 7
    %v52 = vsub.f32 %v30, %v50
    %v53 = vmul.f32 %v52, 1.442695
    %v54 = vpow.pop %v53
    %v56 = vrot.slane %v54, 1
    %v58 = vadd.f32 %v45, %v56
    %vm59 = vcmp.eq.s32.totalorder %v31, 1
    %v61 = vunpack.c.l.s4 1966171168
    %v62 = vunpack.c.0.s8 %v61
    %v63 = vlaneseq
    %v64 = vshrl.u32 %v63, 7
    %v65 = vsub.s32 %v62, %v64
    %v66 = vrot.slane %v30, %v65
    %v67 = vcombine.high %v66, %v66
    %v69 = vunpack.c.l.s4 1966171168
    %v70 = vunpack.c.0.s8 %v69
    %v71 = vlaneseq
    %v72 = vshrl.u32 %v71, 7
    %v73 = vsub.s32 %v70, %v72
    %v74 = vrot.slane %v66, %v73
    %v76 = vunpack.c.l.s4 1966171168
    %v77 = vunpack.c.0.s8 %v76
    %v78 = vlaneseq
    %v79 = vshrl.u32 %v78, 7
    %v80 = vsub.s32 %v77, %v79
    %v81 = vrot.slane %v67, %v80
    %v83 = vsel %vm59, %v81, 0.0
    %v84 = vadd.f32 %v48, %v83
    %v85 = vrot.slane %v41, 6
    %v87 = vsub.f32 %v30, %v85
    %v88 = vmul.f32 %v87, 1.442695
    %v89 = vpow.pop %v88
    %v91 = vrot.slane %v89, 2
    %v93 = vadd.f32 %v58, %v91
    %vm94 = vcmp.eq.s32.totalorder %v31, 2
    %v95 = vcombine.high %v74, %v74
    %v97 = vsel %vm94, %v95, 0.0
    %v98 = vadd.f32 %v84, %v97
    %v99 = vrot.slane %v41, 5
    %v101 = vsub.f32 %v30, %v99
    %v102 = vmul.f32 %v101, 1.442695
    %v103 = vpow.pop %v102
    %v105 = vrot.slane %v103, 3
    %v107 = vadd.f32 %v93, %v105
    %vm108 = vcmp.eq.s32.totalorder %v31, 3
    %v109 = vcombine.high %v81, %v81
    %v111 = vsel %vm108, %v109, 0.0
    %v112 = vadd.f32 %v98, %v111
    %v113 = vsub.f32 %v112, %v41
    %v114 = vlog2.pop %v107
    %v115 = vmul.f32 %v114, 0.6931472
    %v116 = vsub.f32 %v113, %v115
    %v117 = vsub.f32 0.0, %v116
    %v118 = vsub.f32 1.0, %v116
    %v119 = vadd.f32 %v117, %v118
    %v120 = vlaneseq
    %v121 = vand.u32 %v120, 127
    %s122 = smul.u32 0, 128
    %v123 = vstv %s122
    %v124 = vadd.s32 %v121, %v123
    %vm125 = vcmp.lt.s32.totalorder %v124, 8
    %v126 = vsel %vm125, %v119, 0.0
    %v127 = vld [vmem:[#allocation5] sm:$0x1]
    %vm128 = vcmask 1040384
    %v129 = vsel %vm128, %v126, 0.0
    %130 = vadd.xlane.f32.xlu0 %v129
    %v131 = vpop.xlane.xlu0 %130
    %v132 = vrot.slane %v131, 4
    %v133 = vadd.f32 %v131, %v132
    %v134 = vrot.slane %v133, 2
    %v135 = vadd.f32 %v133, %v134
    %v136 = vrot.slane %v135, 1
    %v137 = vadd.f32 %v135, %v136
    %s138 = vtos %v137
    %v139 = vstv %s138
    %v140 = vadd.f32 %v127, %v139
    %vm141 = vcmask 0
    %142 = vst.msk [vmem:[#allocation5] sm:$0x1] %vm141, %v140
    // Predicated region
    $region18: #{tpu_custom_call.1} parent=1 // pred_check
      %p143 = pneg %p24
    $region19: #{tpu_custom_call.1} parent=1 // pred_check_branch
      %145 = sbr.rel (%p143) target = $region21
    $region20: #{tpu_custom_call.1} parent=1 // pred_region
      %v146 = vld [vmem:[#allocation5] sm:$0x1]
      %v147 = vmul.f32 %v146, 0.125
      %148 = vst.msk [vmem:[#allocation5] sm:$0x1] %vm141, %v147
    $region21: #{tpu_custom_call.1} parent=1 // pred_fallthru
      _
    // Predicated region
    $region22: #{tpu_custom_call.1} parent=1 // pred_check
      _
    $region23: #{tpu_custom_call.1} parent=1 // pred_check_branch
      %150 = sbr.rel (0) target = $region25
    $region24: #{tpu_custom_call.1} parent=1 // pred_region
      %s152 = ssub.s32 16, 16
      %153 = vsyncadd [#allocation4], %s152
      %s155 = sshll.u32 [#allocation5], 4
      %s156 = int_to_ptr.vmem [resolvable:$true] %s155
      %158 = dma.vmem_to_hbm [thread:$0]  %s156, 16, %s2, [#allocation4]
    $region25: #{tpu_custom_call.1} parent=1 // pred_fallthru
      _
    // Predicated region
    $region26: #{tpu_custom_call.1} parent=1 // pred_check
      _
    $region27: #{tpu_custom_call.1} parent=1 // pred_check_branch
      %160 = sbr.rel (0) target = $region29
    $region28: #{tpu_custom_call.1} parent=1 // pred_region
      %161 = dma.done [#allocation4], 16
    $region29: #{tpu_custom_call.1} parent=1 // pred_fallthru
      _
    %162 = vsyncpa [#allocation3], 1
    %163 = vsyncpa [#allocation4], 1

</llo_original>
